<compile_context>
chip_gen: v7x
topology: tpu7x:2x2x1
jax: 0.10.0
libtpu: 0.0.40
codegen_flags: <defaults>
</compile_context>

<pallas_src>
import functools

import jax
import jax.numpy as jnp
from jax.experimental import pallas as pl
from jax.experimental.pallas import tpu as pltpu

_EPS = 1e-10


def _seg_loss_kernel(*refs, smooth):
    """One (stage, T-tile) grid step.

    refs when smooth=True:
      p_ref      (1, B, C, tT)   logits tile (stored dtype, e.g. bf16)
      labels_ref (B, tT) i32     frame labels (-1 marks invalid -> no class match)
      masks_ref  (B, tT) bf16    frame masks
      out_ce_ref (1, B, 128) f32 per-(stage,batch) CE sums   (written last tile)
      out_sm_ref (1, B, 128) f32 per-(stage,batch) smooth sums (written last tile)
      acc_ce     VMEM (B, tT) f32   running CE partials (lane-shaped)
      acc_sm     VMEM (B, tT) f32   running smoothing partials
      prev_ref   VMEM (B, C, 1) f32 previous tile's last-frame log-probs
    refs when smooth=False:
      p_ref, labels_ref, out_ce_ref, acc_ce
    """
    if smooth:
        (p_ref, labels_ref, masks_ref, out_ce_ref, out_sm_ref,
         acc_ce, acc_sm, prev_ref) = refs
    else:
        p_ref, labels_ref, out_ce_ref, acc_ce = refs

    j = pl.program_id(1)
    last_j = pl.num_programs(1) - 1

    p = p_ref[0].astype(jnp.float32)            # (B, C, tT) — cast once in VMEM
    B, C, tT = p.shape
    labels = labels_ref[...]                    # (B, tT) int32

    # ---- numerically stable log-softmax over the class (sublane) axis ----
    m = jnp.max(p, axis=1, keepdims=True)                         # (B, 1, tT)
    pm = p - m
    lse = jnp.log(jnp.sum(jnp.exp(pm), axis=1, keepdims=True))    # (B, 1, tT)
    logp = pm - lse                                               # (B, C, tT)

    @pl.when(j == 0)
    def _():
        acc_ce[...] = jnp.zeros_like(acc_ce)
        if smooth:
            acc_sm[...] = jnp.zeros_like(acc_sm)

    # ---- cross-entropy gather: iota-compare + select + class-axis sum -----
    class_ids = jax.lax.broadcasted_iota(jnp.int32, (1, C, tT), 1)
    picked = jnp.where(class_ids == labels[:, None, :], logp, 0.0)  # (B, C, tT)
    # invalid frames (label == -1) match no class id -> CE contribution is 0.
    acc_ce[...] += jnp.sum(picked, axis=1)                          # (B, tT)

    # ---- temporal smoothing: clipped MSE of adjacent-frame log-probs ------
    if smooth:
        masks_f = masks_ref[...].astype(jnp.float32)                # (B, tT)
        shifted = pltpu.roll(logp, shift=1, axis=2)   # [...,0] == logp[...,tT-1]
        # Patch lane 0 of the rolled tile only: at a tile boundary (j > 0) it
        # is the carried previous-tile frame; at the very first frame of the
        # sequence it is logp itself so the diff is exactly 0.  Select (not
        # multiply) keeps any garbage in the uninitialized carry from
        # propagating at j == 0.
        lane0 = jax.lax.broadcasted_iota(jnp.int32, (1, 1, tT), 2) == 0
        bound = jnp.where(j > 0, prev_ref[...], logp[:, :, 0:1])    # (B, C, 1)
        d = logp - jnp.where(lane0, bound, shifted)                 # (B, C, tT)
        sq = jnp.minimum(d * d, 16.0)        # d*d >= 0 -> lower clamp is dead
        # mask does not depend on the class axis: reduce over C first, then
        # one small (B, tT) multiply-add into the accumulator.
        acc_sm[...] += jnp.sum(sq, axis=1) * masks_f                # (B, tT)
        # carry this tile's last frame to the next tile (lane 0 of the rolled
        # tile is an aligned slice of that last frame).
        prev_ref[...] = shifted[:, :, 0:1]

    # ---- finalize: the only vector->scalar-ish reduces, on the last tile --
    @pl.when(j == last_j)
    def _():
        ce_b = jnp.sum(acc_ce[...], axis=1, keepdims=True)          # (B, 1)
        out_ce_ref[0] = jnp.broadcast_to(-ce_b, (B, 128))
        if smooth:
            sm_b = jnp.sum(acc_sm[...], axis=1, keepdims=True)      # (B, 1)
            out_sm_ref[0] = jnp.broadcast_to(sm_b, (B, 128))


def _vmem_budgets():
    """Generation-aware (tile_budget_bytes, vmem_limit_bytes).

    v5e / v6e have 128 MiB physical VMEM -> larger tiles + 64 MiB scoped
    limit; v7x has only 64 MiB -> cap both.
    """
    cap = 128 * 1024 * 1024
    try:
        info = pltpu.get_tpu_info()
        cap = int(getattr(info, "vmem_capacity_bytes", cap) or cap)
    except Exception:
        pass
    if cap >= 96 * 1024 * 1024:          # v5e / v6e
        return 4 << 20, 64 * 1024 * 1024
    return 2 << 20, 40 * 1024 * 1024     # v7x (64 MiB physical)


def _choose_tile_t(T, B, C, budget_f32_bytes):
    """Largest T tile that is a multiple of 128, divides T, and keeps one f32
    working tile under the budget (several live f32 temporaries plus the
    double-buffered bf16 input must fit the scoped-VMEM limit)."""
    if T % 128 != 0:
        return T              # single full-extent tile is always legal
    best = 128
    for cand in range(128, T + 1, 128):
        if T % cand == 0 and B * C * cand * 4 <= budget_f32_bytes:
            best = cand
    return best


def segmentation_loss(head_score, masks, labels, precise_sliding_num, *,
                      num_classes, loss_weight=1.0, smooth_weight=0.5,
                      ignore_index=-100, tile_t=None):
    """head_score: [num_stages, B, C, T] (native PyTorch layout, any float dtype).

    Returns {'loss': scalar} matching SegmentationLoss.forward.
    """
    N, B, C, T = head_score.shape
    assert C == num_classes
    smooth = float(smooth_weight) > 0.0

    # --- stage-invariant scalars hoisted out of the kernel -----------------
    labels_i = labels.astype(jnp.int32)
    valid = labels_i != ignore_index
    num_valid = jnp.sum(valid).astype(jnp.float32)
    # remap ignored frames to -1 so they never match a class id in-kernel,
    # regardless of what ignore_index is.
    labels_k = jnp.where(valid, labels_i, jnp.int32(-1))
    psn = precise_sliding_num.astype(jnp.float32).reshape(B)
    inv_psn = 1.0 / (psn + _EPS)

    tile_budget, vmem_limit = _vmem_budgets()
    if tile_t is None:
        tile_t = _choose_tile_t(T, B, C, tile_budget)
    assert T % tile_t == 0 and (tile_t % 128 == 0 or tile_t == T)
    n_t = T // tile_t

    kernel = functools.partial(_seg_loss_kernel, smooth=smooth)

    in_specs = [
        pl.BlockSpec((1, B, C, tile_t), lambda i, j: (i, 0, 0, j)),   # logits
        pl.BlockSpec((B, tile_t), lambda i, j: (0, j)),               # labels
    ]
    inputs = [head_score, labels_k]
    out_shapes = [jax.ShapeDtypeStruct((N, B, 128), jnp.float32)]
    out_specs = [pl.BlockSpec((1, B, 128), lambda i, j: (i, 0, 0))]
    scratch = [pltpu.VMEM((B, tile_t), jnp.float32)]                  # CE acc
    if smooth:
        in_specs.append(pl.BlockSpec((B, tile_t), lambda i, j: (0, j)))  # masks
        inputs.append(masks.astype(jnp.bfloat16))     # halve the mask HBM bytes
        out_shapes.append(jax.ShapeDtypeStruct((N, B, 128), jnp.float32))
        out_specs.append(pl.BlockSpec((1, B, 128), lambda i, j: (i, 0, 0)))
        scratch += [pltpu.VMEM((B, tile_t), jnp.float32),     # smoothing acc
                    pltpu.VMEM((B, C, 1), jnp.float32)]       # prev-frame carry

    outs = pl.pallas_call(
        kernel,
        out_shape=tuple(out_shapes),
        grid=(N, n_t),
        in_specs=in_specs,
        out_specs=tuple(out_specs),
        scratch_shapes=scratch,
        compiler_params=pltpu.CompilerParams(
            dimension_semantics=("parallel", "arbitrary"),
            vmem_limit_bytes=vmem_limit),
    )(*inputs)

    if smooth:
        out_ce, out_sm = outs
    else:
        (out_ce,) = outs

    # --- tiny per-stage finalize in the wrapper -----------------------------
    ce_stage = jnp.sum(out_ce[:, :, 0] * inv_psn[None, :], axis=1)     # (N,)
    loss = jnp.sum(ce_stage) / (num_valid + _EPS)
    if smooth:
        sm_stage = jnp.sum(out_sm[:, :, 0] * inv_psn[None, :], axis=1)
        loss = loss + smooth_weight * jnp.sum(sm_stage) / (B * C * (T - 1))
    return {"loss": loss * jnp.float32(loss_weight)}


def _reference_loss(head_score, masks, labels, psn, *, num_classes,
                    loss_weight, smooth_weight, ignore_index):
    """Pure-JAX reference mirroring the PyTorch forward (for self-check)."""
    N, B, C, T = head_score.shape
    eps = _EPS
    loss = jnp.float32(0.0)
    for s in range(N):
        p = head_score[s].astype(jnp.float32)        # (B, C, T)
        logp = jax.nn.log_softmax(p, axis=1)
        valid = (labels != ignore_index)
        safe_lbl = jnp.where(valid, labels, 0)
        onehot = jax.nn.one_hot(safe_lbl, C, axis=1) * valid[:, None, :]
        ce = -jnp.sum(logp * onehot, axis=1)          # (B, T)
        num_valid = jnp.sum(valid)
        loss = loss + jnp.sum(jnp.sum(ce, axis=-1) / (psn + eps)) / (num_valid + eps)
        if smooth_weight > 0.0:
            d = logp[:, :, 1:] - logp[:, :, :-1]
            sq = jnp.clip(d * d, 0.0, 16.0) * masks[:, None, 1:]
            per_b = jnp.mean(sq.reshape(B, -1), axis=-1)
            loss = loss + smooth_weight * jnp.mean(per_b / (psn + eps))
    return loss * loss_weight


if __name__ == "__main__":
    num_stages = 3
    B, num_classes, T = 2, 16, 256

    key = jax.random.PRNGKey(0)
    k0, k1 = jax.random.split(key)

    # head_score in native PyTorch layout [num_stages, B, C, T]; bf16 as a
    # model head would typically emit it (kernel casts to f32 once in VMEM).
    head_score = jax.random.normal(
        k0, (num_stages, B, num_classes, T), dtype=jnp.float32).astype(jnp.bfloat16)

    labels = jax.random.randint(k1, (B, T), 0, num_classes, dtype=jnp.int32)
    # make the last two frames of each clip "ignored"
    labels = labels.at[:, -2:].set(-100)
    masks = (labels != -100).astype(jnp.float32)
    precise_sliding_num = jnp.array([1.0, 2.0], dtype=jnp.float32)

    # tile_t=128 -> 2 T-tiles: exercises the cross-tile carry + accumulation.
    out = segmentation_loss(
        head_score, masks, labels, precise_sliding_num,
        num_classes=num_classes, loss_weight=1.0, smooth_weight=0.5,
        ignore_index=-100, tile_t=128)
    loss = jax.block_until_ready(out["loss"])
    ref = jax.block_until_ready(_reference_loss(
        head_score, masks, labels, precise_sliding_num,
        num_classes=num_classes, loss_weight=1.0, smooth_weight=0.5,
        ignore_index=-100))
    assert jnp.allclose(loss, ref, rtol=5e-5, atol=5e-5), (loss, ref)

    # also exercise the smooth_weight == 0 path (no masks input / sm output).
    out0 = segmentation_loss(
        head_score, masks, labels, precise_sliding_num,
        num_classes=num_classes, loss_weight=1.0, smooth_weight=0.0,
        ignore_index=-100, tile_t=128)
    loss0 = jax.block_until_ready(out0["loss"])
    ref0 = jax.block_until_ready(_reference_loss(
        head_score, masks, labels, precise_sliding_num,
        num_classes=num_classes, loss_weight=1.0, smooth_weight=0.0,
        ignore_index=-100))
    assert jnp.allclose(loss0, ref0, rtol=5e-5, atol=5e-5), (loss0, ref0)

    print("KERNEL_OK")
</pallas_src>

<mosaic_0001>
module attributes {stable_mosaic.version = 11 : i64} {
  func.func @_seg_loss_kernel(%arg0: i32, %arg1: i32, %arg2: memref<1x2x16x128xbf16, #tpu.memory_space<vmem>>, %arg3: memref<2x128xi32, #tpu.memory_space<vmem>>, %arg4: memref<2x128xbf16, #tpu.memory_space<vmem>>, %arg5: memref<1x2x128xf32, #tpu.memory_space<vmem>>, %arg6: memref<1x2x128xf32, #tpu.memory_space<vmem>>, %arg7: memref<2x128xf32, #tpu.memory_space<vmem>>, %arg8: memref<2x128xf32, #tpu.memory_space<vmem>>, %arg9: memref<2x16x1xf32, #tpu.memory_space<vmem>>) attributes {dimension_semantics = [#tpu.dimension_semantics<parallel>, #tpu.dimension_semantics<arbitrary>], iteration_bounds = array<i64: 3, 2>, scalar_prefetch = 0 : i64, scratch_operands = 3 : i64, tpu.core_type = #tpu.core_type<tc>, window_params = [{transform_indices = @transform_0, window_bounds = array<i64: 1, 2, 16, 128>}, {transform_indices = @transform_1, window_bounds = array<i64: 2, 128>}, {transform_indices = @transform_2, window_bounds = array<i64: 2, 128>}, {transform_indices = @transform_3, window_bounds = array<i64: 1, 2, 128>}, {transform_indices = @transform_4, window_bounds = array<i64: 1, 2, 128>}]} {
    %c0 = arith.constant 0 : index
    %c0_0 = arith.constant 0 : index
    %c0_1 = arith.constant 0 : index
    %c0_2 = arith.constant 0 : index
    %0 = vector.load %arg2[%c0, %c0_0, %c0_1, %c0_2] : memref<1x2x16x128xbf16, #tpu.memory_space<vmem>>, vector<1x2x16x128xbf16>
    %1 = vector.shape_cast %0 : vector<1x2x16x128xbf16> to vector<2x16x128xbf16>
    %2 = arith.extf %1 : vector<2x16x128xbf16> to vector<2x16x128xf32>
    %c0_3 = arith.constant 0 : index
    %c0_4 = arith.constant 0 : index
    %3 = vector.load %arg3[%c0_3, %c0_4] : memref<2x128xi32, #tpu.memory_space<vmem>>, vector<2x128xi32>
    %cst = arith.constant dense<0xFF800000> : vector<2x128xf32>
    %4 = vector.multi_reduction <maximumf>, %2, %cst [1] : vector<2x16x128xf32> to vector<2x128xf32>
    %5 = vector.shape_cast %4 : vector<2x128xf32> to vector<2x1x128xf32>
    %6 = vector.broadcast %5 : vector<2x1x128xf32> to vector<2x16x128xf32>
    %7 = arith.subf %2, %6 : vector<2x16x128xf32>
    %8 = math.exp %7 : vector<2x16x128xf32>
    %cst_5 = arith.constant dense<0.000000e+00> : vector<2x128xf32>
    %9 = vector.multi_reduction <add>, %8, %cst_5 [1] : vector<2x16x128xf32> to vector<2x128xf32>
    %10 = vector.shape_cast %9 : vector<2x128xf32> to vector<2x1x128xf32>
    %11 = math.log %10 : vector<2x1x128xf32>
    %12 = vector.broadcast %11 : vector<2x1x128xf32> to vector<2x16x128xf32>
    %13 = arith.subf %7, %12 : vector<2x16x128xf32>
    %c0_i32 = arith.constant 0 : i32
    %14 = arith.cmpi eq, %arg1, %c0_i32 : i32
    %15 = arith.extui %14 : i1 to i32
    %c0_i32_6 = arith.constant 0 : i32
    %16 = arith.cmpi ne, %15, %c0_i32_6 : i32
    scf.if %16 {
      %cst_31 = arith.constant 0.000000e+00 : f32
      %57 = vector.broadcast %cst_31 : f32 to vector<2x128xf32>
      %c0_32 = arith.constant 0 : index
      %c0_33 = arith.constant 0 : index
      %58 = vector.load %arg7[%c0_32, %c0_33] : memref<2x128xf32, #tpu.memory_space<vmem>>, vector<2x128xf32>
      tpu.vector_store %arg7[%c0_32, %c0_33], %57 {strides = array<i32>} : memref<2x128xf32, #tpu.memory_space<vmem>>, vector<2x128xf32>,
      %cst_34 = arith.constant 0.000000e+00 : f32
      %59 = vector.broadcast %cst_34 : f32 to vector<2x128xf32>
      %c0_35 = arith.constant 0 : index
      %c0_36 = arith.constant 0 : index
      %60 = vector.load %arg8[%c0_35, %c0_36] : memref<2x128xf32, #tpu.memory_space<vmem>>, vector<2x128xf32>
      tpu.vector_store %arg8[%c0_35, %c0_36], %59 {strides = array<i32>} : memref<2x128xf32, #tpu.memory_space<vmem>>, vector<2x128xf32>,
    } else {
    }
    %17 = tpu.iota {dimensions = array<i32: 1>} : vector<1x16x128xi32>
    %18 = vector.shape_cast %3 : vector<2x128xi32> to vector<2x1x128xi32>
    %19 = vector.broadcast %17 : vector<1x16x128xi32> to vector<2x16x128xi32>
    %20 = vector.broadcast %18 : vector<2x1x128xi32> to vector<2x16x128xi32>
    %21 = arith.cmpi eq, %19, %20 : vector<2x16x128xi32>
    %cst_7 = arith.constant 0.000000e+00 : f32
    %22 = vector.broadcast %cst_7 : f32 to vector<2x16x128xf32>
    %23 = arith.select %21, %13, %22 : vector<2x16x128xi1>, vector<2x16x128xf32>
    %c0_8 = arith.constant 0 : index
    %c0_9 = arith.constant 0 : index
    %24 = vector.load %arg7[%c0_8, %c0_9] : memref<2x128xf32, #tpu.memory_space<vmem>>, vector<2x128xf32>
    %cst_10 = arith.constant dense<0.000000e+00> : vector<2x128xf32>
    %25 = vector.multi_reduction <add>, %23, %cst_10 [1] : vector<2x16x128xf32> to vector<2x128xf32>
    %26 = arith.addf %24, %25 : vector<2x128xf32>
    %c0_11 = arith.constant 0 : index
    %c0_12 = arith.constant 0 : index
    %27 = vector.load %arg7[%c0_11, %c0_12] : memref<2x128xf32, #tpu.memory_space<vmem>>, vector<2x128xf32>
    tpu.vector_store %arg7[%c0_11, %c0_12], %26 {strides = array<i32>} : memref<2x128xf32, #tpu.memory_space<vmem>>, vector<2x128xf32>,
    %c0_13 = arith.constant 0 : index
    %c0_14 = arith.constant 0 : index
    %28 = vector.load %arg4[%c0_13, %c0_14] : memref<2x128xbf16, #tpu.memory_space<vmem>>, vector<2x128xbf16>
    %29 = arith.extf %28 : vector<2x128xbf16> to vector<2x128xf32>
    %c1_i32 = arith.constant 1 : i32
    %30 = tpu.dynamic_rotate %13 by %c1_i32 dim 2 : vector<2x16x128xf32>, i32 -> vector<2x16x128xf32>
    %31 = tpu.iota {dimensions = array<i32: 2>} : vector<1x1x128xi32>
    %c0_i32_15 = arith.constant 0 : i32
    %32 = vector.broadcast %c0_i32_15 : i32 to vector<1x1x128xi32>
    %33 = arith.cmpi eq, %31, %32 : vector<1x1x128xi32>
    %c0_i32_16 = arith.constant 0 : i32
    %34 = arith.cmpi sgt, %arg1, %c0_i32_16 : i32
    %c0_17 = arith.constant 0 : index
    %c0_18 = arith.constant 0 : index
    %c0_19 = arith.constant 0 : index
    %35 = vector.load %arg9[%c0_17, %c0_18, %c0_19] : memref<2x16x1xf32, #tpu.memory_space<vmem>>, vector<2x16x1xf32>
    %36 = vector.extract_strided_slice %13 {offsets = [0, 0, 0], sizes = [2, 16, 1], strides = [1, 1, 1]} : vector<2x16x128xf32> to vector<2x16x1xf32>
    %37 = arith.select %34, %35, %36 : vector<2x16x1xf32>
    %38 = vector.shape_cast %33 : vector<1x1x128xi1> to vector<1x1x128xi1>
    %39 = vector.broadcast %38 : vector<1x1x128xi1> to vector<2x16x128xi1>
    %40 = vector.shape_cast %37 : vector<2x16x1xf32> to vector<2x16x1xf32>
    %41 = vector.broadcast %40 : vector<2x16x1xf32> to vector<2x16x128xf32>
    %42 = arith.select %39, %41, %30 : vector<2x16x128xi1>, vector<2x16x128xf32>
    %43 = arith.subf %13, %42 : vector<2x16x128xf32>
    %44 = arith.mulf %43, %43 : vector<2x16x128xf32>
    %cst_20 = arith.constant 1.600000e+01 : f32
    %45 = vector.broadcast %cst_20 : f32 to vector<2x16x128xf32>
    %46 = arith.minimumf %44, %45 : vector<2x16x128xf32>
    %c0_21 = arith.constant 0 : index
    %c0_22 = arith.constant 0 : index
    %47 = vector.load %arg8[%c0_21, %c0_22] : memref<2x128xf32, #tpu.memory_space<vmem>>, vector<2x128xf32>
    %cst_23 = arith.constant dense<0.000000e+00> : vector<2x128xf32>
    %48 = vector.multi_reduction <add>, %46, %cst_23 [1] : vector<2x16x128xf32> to vector<2x128xf32>
    %49 = arith.mulf %48, %29 : vector<2x128xf32>
    %50 = arith.addf %47, %49 : vector<2x128xf32>
    %c0_24 = arith.constant 0 : index
    %c0_25 = arith.constant 0 : index
    %51 = vector.load %arg8[%c0_24, %c0_25] : memref<2x128xf32, #tpu.memory_space<vmem>>, vector<2x128xf32>
    tpu.vector_store %arg8[%c0_24, %c0_25], %50 {strides = array<i32>} : memref<2x128xf32, #tpu.memory_space<vmem>>, vector<2x128xf32>,
    %52 = vector.extract_strided_slice %30 {offsets = [0, 0, 0], sizes = [2, 16, 1], strides = [1, 1, 1]} : vector<2x16x128xf32> to vector<2x16x1xf32>
    %c0_26 = arith.constant 0 : index
    %c0_27 = arith.constant 0 : index
    %c0_28 = arith.constant 0 : index
    %53 = vector.load %arg9[%c0_26, %c0_27, %c0_28] : memref<2x16x1xf32, #tpu.memory_space<vmem>>, vector<2x16x1xf32>
    tpu.vector_store %arg9[%c0_26, %c0_27, %c0_28], %52 {strides = array<i32>} : memref<2x16x1xf32, #tpu.memory_space<vmem>>, vector<2x16x1xf32>,
    %c1_i32_29 = arith.constant 1 : i32
    %54 = arith.cmpi eq, %arg1, %c1_i32_29 : i32
    %55 = arith.extui %54 : i1 to i32
    %c0_i32_30 = arith.constant 0 : i32
    %56 = arith.cmpi ne, %55, %c0_i32_30 : i32
    scf.if %56 {
      %c0_31 = arith.constant 0 : index
      %c0_32 = arith.constant 0 : index
      %57 = vector.load %arg7[%c0_31, %c0_32] : memref<2x128xf32, #tpu.memory_space<vmem>>, vector<2x128xf32>
      %cst_33 = arith.constant dense<0.000000e+00> : vector<2xf32>
      %58 = vector.multi_reduction <add>, %57, %cst_33 [1] : vector<2x128xf32> to vector<2xf32>
      %59 = vector.shape_cast %58 : vector<2xf32> to vector<2x1xf32>
      %cst_34 = arith.constant 0.000000e+00 : f32
      %60 = vector.broadcast %cst_34 : f32 to vector<2x1xf32>
      %61 = arith.subf %60, %59 : vector<2x1xf32>
      %62 = vector.shape_cast %61 : vector<2x1xf32> to vector<2x1xf32>
      %63 = vector.broadcast %62 : vector<2x1xf32> to vector<2x128xf32>
      %c0_35 = arith.constant 0 : index
      %c0_36 = arith.constant 0 : index
      %c0_37 = arith.constant 0 : index
      %64 = vector.load %arg5[%c0_35, %c0_36, %c0_37] : memref<1x2x128xf32, #tpu.memory_space<vmem>>, vector<1x2x128xf32>
      %65 = vector.shape_cast %64 : vector<1x2x128xf32> to vector<2x128xf32>
      %66 = vector.shape_cast %63 : vector<2x128xf32> to vector<1x2x128xf32>
      tpu.vector_store %arg5[%c0_35, %c0_36, %c0_37], %66 {strides = array<i32>} : memref<1x2x128xf32, #tpu.memory_space<vmem>>, vector<1x2x128xf32>,
      %c0_38 = arith.constant 0 : index
      %c0_39 = arith.constant 0 : index
      %67 = vector.load %arg8[%c0_38, %c0_39] : memref<2x128xf32, #tpu.memory_space<vmem>>, vector<2x128xf32>
      %cst_40 = arith.constant dense<0.000000e+00> : vector<2xf32>
      %68 = vector.multi_reduction <add>, %67, %cst_40 [1] : vector<2x128xf32> to vector<2xf32>
      %69 = vector.shape_cast %68 : vector<2xf32> to vector<2x1xf32>
      %70 = vector.shape_cast %69 : vector<2x1xf32> to vector<2x1xf32>
      %71 = vector.broadcast %70 : vector<2x1xf32> to vector<2x128xf32>
      %c0_41 = arith.constant 0 : index
      %c0_42 = arith.constant 0 : index
      %c0_43 = arith.constant 0 : index
      %72 = vector.load %arg6[%c0_41, %c0_42, %c0_43] : memref<1x2x128xf32, #tpu.memory_space<vmem>>, vector<1x2x128xf32>
      %73 = vector.shape_cast %72 : vector<1x2x128xf32> to vector<2x128xf32>
      %74 = vector.shape_cast %71 : vector<2x128xf32> to vector<1x2x128xf32>
      tpu.vector_store %arg6[%c0_41, %c0_42, %c0_43], %74 {strides = array<i32>} : memref<1x2x128xf32, #tpu.memory_space<vmem>>, vector<1x2x128xf32>,
    } else {
    }
    return
  }
  func.func @transform_0(%arg0: i32, %arg1: i32) -> (i32, i32, i32, i32) {
    %c0_i32 = arith.constant 0 : i32
    %c0_i32_0 = arith.constant 0 : i32
    %c0_i32_1 = arith.constant 0 : i32
    return %arg0, %c0_i32, %c0_i32_0, %arg1 : i32, i32, i32, i32
  }
  func.func @transform_1(%arg0: i32, %arg1: i32) -> (i32, i32) {
    %c0_i32 = arith.constant 0 : i32
    %c0_i32_0 = arith.constant 0 : i32
    return %c0_i32, %arg1 : i32, i32
  }
  func.func @transform_2(%arg0: i32, %arg1: i32) -> (i32, i32) {
    %c0_i32 = arith.constant 0 : i32
    %c0_i32_0 = arith.constant 0 : i32
    return %c0_i32, %arg1 : i32, i32
  }
  func.func @transform_3(%arg0: i32, %arg1: i32) -> (i32, i32, i32) {
    %c0_i32 = arith.constant 0 : i32
    %c0_i32_0 = arith.constant 0 : i32
    %c0_i32_1 = arith.constant 0 : i32
    return %arg0, %c0_i32, %c0_i32_0 : i32, i32, i32
  }
  func.func @transform_4(%arg0: i32, %arg1: i32) -> (i32, i32, i32) {
    %c0_i32 = arith.constant 0 : i32
    %c0_i32_0 = arith.constant 0 : i32
    %c0_i32_1 = arith.constant 0 : i32
    return %arg0, %c0_i32, %c0_i32_0 : i32, i32, i32
  }
}

</mosaic_0001>

<llo_original>
// kernel: tpu_custom_call.1
$region0: #{tpu_custom_call.1}
  #allocation0 [shape = 'u32[]', space=smem, size = 0x4, offset = 0x4, fixed_abs, tag = 'smem constant byte address 0x4 - core index']
  #allocation1 [shape = 'u32[144,128]{1,0:T(1,128)}', space=vmem, size = 0x12000, scoped, tag = 'internal scratch']
  #allocation2 [shape = 'f32[2,128]{1,0:T(2,128)}', space=vmem, size = 0x400, scoped, tag = 'scratch operand']
  #allocation3 [shape = 'f32[2,128]{1,0:T(2,128)}', space=vmem, size = 0x400, scoped, tag = 'scratch operand']
  #allocation4 [shape = 'f32[2,16,1]{2,1,0:T(8,128)}', space=vmem, size = 0x4000, scoped, tag = 'scratch operand']
  %s0 = inlined_call_operand.hbm [shape: bf16[3,2,16,256], index: 0, kind: input, shape index: {}]
  %s1 = inlined_call_operand.hbm [shape: s32[2,256], index: 1, kind: input, shape index: {}]
  %s2 = inlined_call_operand.hbm [shape: bf16[2,256], index: 2, kind: input, shape index: {}]
  %s3 = inlined_call_operand.hbm [shape: f32[3,2,128], index: 3, kind: output, shape index: {0}]
  %s4 = inlined_call_operand.hbm [shape: f32[3,2,128], index: 4, kind: output, shape index: {1}]
  %5 = xla_tuple %s3, %s4
  %s6 = sld [smem:[#allocation0]]
  $region73: #{tpu_custom_call.1} parent=0
    _
  %s8 = ssub.s32 1, %s6
  %s9 = scalar_select 0, %s8, %s6
  $region1: #{tpu_custom_call.1} parent=0
    #allocation5 [shape = 'u8[16384]{0}', space=vmem, size = 0x4000, scoped, tag = 'input window, operand 0']
    #allocation6 [shape = 's32[2]{0}', space=sflag, size = 0x8, scoped, tag = 'scoped memory for tpu_custom_call.1']
    #allocation7 [shape = 's32[2]{0}', space=sflag, size = 0x8, scoped, tag = 'scoped memory for tpu_custom_call.1']
    #allocation8 [shape = 'u8[2048]{0}', space=vmem, size = 0x800, scoped, tag = 'input window, operand 1']
    #allocation9 [shape = 's32[2]{0}', space=sflag, size = 0x8, scoped, tag = 'scoped memory for tpu_custom_call.1']
    #allocation10 [shape = 'u8[1024]{0}', space=vmem, size = 0x400, scoped, tag = 'input window, operand 2']
    #allocation11 [shape = 'u8[2048]{0}', space=vmem, size = 0x800, scoped, tag = 'output window, operand 0']
    #allocation12 [shape = 'u8[2048]{0}', space=vmem, size = 0x800, scoped, tag = 'output window, operand 1']
    #allocation13 [shape = 's32[2]{0}', space=sflag, size = 0x8, scoped, tag = 'scoped memory for tpu_custom_call.1']
    %10 = vsyncpa [#allocation6], 0
    %s11 = scalar_lea.sflag [#allocation6], 1
    %12 = vsyncpa %s11, 0
    %13 = vsyncpa [#allocation9], 0
    %s14 = scalar_lea.sflag [#allocation9], 1
    %15 = vsyncpa %s14, 0
    %16 = vsyncpa [#allocation7], 0
    %s17 = scalar_lea.sflag [#allocation7], 1
    %18 = vsyncpa %s17, 0
    %19 = vsyncpa [#allocation13], 0
    %s20 = scalar_lea.sflag [#allocation13], 1
    %21 = vsyncpa %s20, 0
    loop: start=0, step=1, limit=8
    $region2: #{tpu_custom_call.1} parent=1 // loop_pre_header
      _
    $region3: #{tpu_custom_call.1} parent=1 // loop_header
      %s23 = sphi 0, %s27
      %p24 = scmp.ge.s32.totalorder %s23, 8
      %s30 = sphi 0, %s42
      %s31 = sphi 0, %s38
      %s32 = sphi 0, %s30
      %s33 = sphi 0, %s31
      %s34 = sphi 0, %s32
      %s35 = sphi 0, %s33
      %s47 = sphi 0, %s49
      %s50 = sphi 0, %s47
      %s51 = sphi 0, %s50
      %s67 = sphi 0, %s51
      %s73 = sphi 0, %s75
      %s76 = sphi 0, %s73
      %s77 = sphi 0, %s76
      %s93 = sphi 0, %s77
      %s99 = sphi 0, %s101
      %s102 = sphi 0, %s99
      %s103 = sphi 0, %s102
      %s119 = sphi 0, %s103
      %s125 = sphi 0, %s127
      %s128 = sphi 0, %s125
      %s129 = sphi 0, %s128
      %s145 = sphi 0, %s129
      %s151 = sphi 0, %s153
      %s154 = sphi 0, %s151
      %s155 = sphi 0, %s154
      %s171 = sphi 0, %s155
    $region4: #{tpu_custom_call.1} parent=1 // loop_header_branch
      %26 = sbr.rel (%p24) target = $region8
    $region5: #{tpu_custom_call.1} parent=1 // loop_body
      %s28 = ssub.s32 %s23, 1
      %s29 = ssub.s32 %s23, 2
      %s36 = sadd.s32 1, %s31
      %p37 = scmp.ge.s32.totalorder %s36, 2
      %s38 = scalar_select %p37, 0, %s36
      %s39 = sadd.s32 1, %s30
      %s40 = scalar_select %p37, %s39, %s30
      %p41 = scmp.ge.s32.totalorder %s40, 3
      %s42 = scalar_select %p41, 0, %s40
      %s43 = ssub.s32 %s30, %s42
      %s44 = ssub.s32 %s31, %s38
      %s45 = sor.u32 %s43, %s44
      %p46 = scmp.eq.s32.totalorder %s45, 0
      %s48 = sadd.s32 %s47, 1
      %s49 = scalar_select %p46, %s47, %s48
      %p52 = pneg %p46
      %p53 = scmp.eq.s32.totalorder %s23, 5
      %p54 = por %p52, %p53
      %p55 = scmp.ne.s32.totalorder %s47, %s50
      %p56 = scmp.eq.s32.totalorder %s23, 0
      %p57 = por %p55, %p56
      %p58 = scmp.ne.s32.totalorder %s47, %s50
      %p59 = scmp.eq.s32.totalorder %s28, 5
      %p60 = por %p58, %p59
      %p61 = scmp.ne.s32.totalorder %s50, %s51
      %p62 = scmp.eq.s32.totalorder %s28, 0
      %p63 = por %p61, %p62
      %p64 = scmp.ne.s32.totalorder %s50, %s51
      %p65 = scmp.eq.s32.totalorder %s29, 5
      %p66 = por %p64, %p65
      %p68 = scmp.ne.s32.totalorder %s51, %s67
      %p69 = scmp.eq.s32.totalorder %s29, 0
      %p70 = por %p68, %p69
      %s71 = ssub.s32 %s31, %s38
      %p72 = scmp.eq.s32.totalorder %s71, 0
      %s74 = sadd.s32 %s73, 1
      %s75 = scalar_select %p72, %s73, %s74
      %p78 = pneg %p72
      %p79 = scmp.eq.s32.totalorder %s23, 5
      %p80 = por %p78, %p79
      %p81 = scmp.ne.s32.totalorder %s73, %s76
      %p82 = scmp.eq.s32.totalorder %s23, 0
      %p83 = por %p81, %p82
      %p84 = scmp.ne.s32.totalorder %s73, %s76
      %p85 = scmp.eq.s32.totalorder %s28, 5
      %p86 = por %p84, %p85
      %p87 = scmp.ne.s32.totalorder %s76, %s77
      %p88 = scmp.eq.s32.totalorder %s28, 0
      %p89 = por %p87, %p88
      %p90 = scmp.ne.s32.totalorder %s76, %s77
      %p91 = scmp.eq.s32.totalorder %s29, 5
      %p92 = por %p90, %p91
      %p94 = scmp.ne.s32.totalorder %s77, %s93
      %p95 = scmp.eq.s32.totalorder %s29, 0
      %p96 = por %p94, %p95
      %s97 = ssub.s32 %s31, %s38
      %p98 = scmp.eq.s32.totalorder %s97, 0
      %s100 = sadd.s32 %s99, 1
      %s101 = scalar_select %p98, %s99, %s100
      %p104 = pneg %p98
      %p105 = scmp.eq.s32.totalorder %s23, 5
      %p106 = por %p104, %p105
      %p107 = scmp.ne.s32.totalorder %s99, %s102
      %p108 = scmp.eq.s32.totalorder %s23, 0
      %p109 = por %p107, %p108
      %p110 = scmp.ne.s32.totalorder %s99, %s102
      %p111 = scmp.eq.s32.totalorder %s28, 5
      %p112 = por %p110, %p111
      %p113 = scmp.ne.s32.totalorder %s102, %s103
      %p114 = scmp.eq.s32.totalorder %s28, 0
      %p115 = por %p113, %p114
      %p116 = scmp.ne.s32.totalorder %s102, %s103
      %p117 = scmp.eq.s32.totalorder %s29, 5
      %p118 = por %p116, %p117
      %p120 = scmp.ne.s32.totalorder %s103, %s119
      %p121 = scmp.eq.s32.totalorder %s29, 0
      %p122 = por %p120, %p121
      %s123 = ssub.s32 %s30, %s42
      %p124 = scmp.eq.s32.totalorder %s123, 0
      %s126 = sadd.s32 %s125, 1
      %s127 = scalar_select %p124, %s125, %s126
      %p130 = pneg %p124
      %p131 = scmp.eq.s32.totalorder %s23, 5
      %p132 = por %p130, %p131
      %p133 = scmp.ne.s32.totalorder %s125, %s128
      %p134 = scmp.eq.s32.totalorder %s23, 0
      %p135 = por %p133, %p134
      %p136 = scmp.ne.s32.totalorder %s125, %s128
      %p137 = scmp.eq.s32.totalorder %s28, 5
      %p138 = por %p136, %p137
      %p139 = scmp.ne.s32.totalorder %s128, %s129
      %p140 = scmp.eq.s32.totalorder %s28, 0
      %p141 = por %p139, %p140
      %p142 = scmp.ne.s32.totalorder %s128, %s129
      %p143 = scmp.eq.s32.totalorder %s29, 5
      %p144 = por %p142, %p143
      %p146 = scmp.ne.s32.totalorder %s129, %s145
      %p147 = scmp.eq.s32.totalorder %s29, 0
      %p148 = por %p146, %p147
      %s149 = ssub.s32 %s30, %s42
      %p150 = scmp.eq.s32.totalorder %s149, 0
      %s152 = sadd.s32 %s151, 1
      %s153 = scalar_select %p150, %s151, %s152
      %p156 = pneg %p150
      %p157 = scmp.eq.s32.totalorder %s23, 5
      %p158 = por %p156, %p157
      %p159 = scmp.ne.s32.totalorder %s151, %s154
      %p160 = scmp.eq.s32.totalorder %s23, 0
      %p161 = por %p159, %p160
      %p162 = scmp.ne.s32.totalorder %s151, %s154
      %p163 = scmp.eq.s32.totalorder %s28, 5
      %p164 = por %p162, %p163
      %p165 = scmp.ne.s32.totalorder %s154, %s155
      %p166 = scmp.eq.s32.totalorder %s28, 0
      %p167 = por %p165, %p166
      %p168 = scmp.ne.s32.totalorder %s154, %s155
      %p169 = scmp.eq.s32.totalorder %s29, 5
      %p170 = por %p168, %p169
      %p172 = scmp.ne.s32.totalorder %s155, %s171
      %p173 = scmp.eq.s32.totalorder %s29, 0
      %p174 = por %p172, %p173
      %p175 = scmp.le.s32.totalorder 1, %s23
      %p176 = scmp.lt.s32.totalorder %s23, 7
      %p177 = pnand %p175, %p176
      %p178 = pneg %p177
      // Predicated region
      $region9: #{tpu_custom_call.1} parent=5 // pred_check
        _
      $region10: #{tpu_custom_call.1} parent=5 // pred_check_branch
        %180 = sbr.rel (%p177) target = $region12
      $region11: #{tpu_custom_call.1} parent=5 // pred_region
        %s181 = ssub.s32 %s23, 1
      $region12: #{tpu_custom_call.1} parent=5 // pred_fallthru
        _
      %p182 = scmp.lt.s32.totalorder %s23, 6
      // Predicated region
      $region13: #{tpu_custom_call.1} parent=5 // pred_check
        %p183 = pneg %p182
      $region14: #{tpu_custom_call.1} parent=5 // pred_check_branch
        %185 = sbr.rel (%p183) target = $region16
      $region15: #{tpu_custom_call.1} parent=5 // pred_region
        // Predicated region
        $region17: #{tpu_custom_call.1} parent=15 // pred_check
          %p186 = pneg %p57
        $region18: #{tpu_custom_call.1} parent=15 // pred_check_branch
          %188 = sbr.rel (%p186) target = $region20
        $region19: #{tpu_custom_call.1} parent=15 // pred_region
          %s189 = sand.u32 %s47, 1
          %s190 = scalar_lea.sflag [#allocation6], %s189
          %s191 = sand.u32 %s47, 1
          %s192 = smul.addr %s191, 16
          %s193 = scalar_lea.vmem [#allocation5], %s192
          %s195 = ssub.s32 256, 256
          %196 = vsyncadd %s190, %s195
          %s197 = smul.addr %s30, 8
          %s198 = sadd.s32 %s31, %s197
          %s199 = smul.addr %s198, 64
          %s200 = scalar_lea.hbm %s0, %s199
          %s201 = sshll.u32 %s193, 4
          %s202 = int_to_ptr.vmem [resolvable:$true] %s201
          %207 = dma.hbm_to_vmem [thread:$0]  %s200, 256, %s202, %s190, 128, 64, 4
        $region20: #{tpu_custom_call.1} parent=15 // pred_fallthru
          _
        // Predicated region
        $region21: #{tpu_custom_call.1} parent=15 // pred_check
          %p208 = pneg %p83
        $region22: #{tpu_custom_call.1} parent=15 // pred_check_branch
          %210 = sbr.rel (%p208) target = $region24
        $region23: #{tpu_custom_call.1} parent=15 // pred_region
          %s211 = sand.u32 %s23, 1
          %s212 = scalar_lea.sflag [#allocation9], %s211
          %s213 = sand.u32 %s73, 1
          %s214 = smul.addr %s213, 2
          %s215 = scalar_lea.vmem [#allocation8], %s214
          %s217 = ssub.s32 32, 32
          %218 = vsyncadd %s212, %s217
          %s219 = smul.addr %s31, 32
          %s220 = scalar_lea.hbm %s1, %s219
          %s222 = sshll.u32 %s215, 4
          %s223 = int_to_ptr.vmem [resolvable:$true] %s222
          %225 = dma.hbm_to_vmem [thread:$0]  %s220, 32, %s223, %s212
        $region24: #{tpu_custom_call.1} parent=15 // pred_fallthru
          _
        // Predicated region
        $region25: #{tpu_custom_call.1} parent=15 // pred_check
          %p226 = pneg %p109
        $region26: #{tpu_custom_call.1} parent=15 // pred_check_branch
          %228 = sbr.rel (%p226) target = $region28
        $region27: #{tpu_custom_call.1} parent=15 // pred_region
          %s229 = sand.u32 %s23, 1
          %s230 = scalar_lea.sflag [#allocation9], %s229
          %s231 = sand.u32 %s99, 1
          %s232 = scalar_lea.vmem [#allocation10], %s231
          %s234 = ssub.s32 16, 16
          %235 = vsyncadd %s230, %s234
          %s236 = smul.addr %s31, 16
          %s237 = scalar_lea.hbm %s2, %s236
          %s239 = sshll.u32 %s232, 4
          %s240 = int_to_ptr.vmem [resolvable:$true] %s239
          %242 = dma.hbm_to_vmem [thread:$0]  %s237, 16, %s240, %s230
        $region28: #{tpu_custom_call.1} parent=15 // pred_fallthru
          _
      $region16: #{tpu_custom_call.1} parent=5 // pred_fallthru
        _
      %p243 = scmp.le.s32.totalorder 1, %s23
      %p244 = scmp.lt.s32.totalorder %s23, 7
      %p245 = pnand %p243, %p244
      %p246 = pneg %p245
      // Predicated region
      $region29: #{tpu_custom_call.1} parent=5 // pred_check
        _
      $region30: #{tpu_custom_call.1} parent=5 // pred_check_branch
        %248 = sbr.rel (%p245) target = $region32
      $region31: #{tpu_custom_call.1} parent=5 // pred_region
        %s249 = ssub.s32 %s23, 1
        %s250 = sand.u32 %s50, 1
        %s251 = scalar_lea.sflag [#allocation6], %s250
        %s252 = sand.u32 %s50, 1
        %s253 = smul.addr %s252, 16
        %s254 = scalar_lea.vmem [#allocation5], %s253
        // Predicated region
        $region33: #{tpu_custom_call.1} parent=31 // pred_check
          %p255 = pneg %p63
        $region34: #{tpu_custom_call.1} parent=31 // pred_check_branch
          %257 = sbr.rel (%p255) target = $region36
        $region35: #{tpu_custom_call.1} parent=31 // pred_region
          %258 = dma.done %s251, 256
        $region36: #{tpu_custom_call.1} parent=31 // pred_fallthru
          _
        %s259 = sand.u32 %s28, 1
        %s260 = scalar_lea.sflag [#allocation9], %s259
        %s261 = sand.u32 %s76, 1
        %s262 = smul.addr %s261, 2
        %s263 = scalar_lea.vmem [#allocation8], %s262
        // Predicated region
        $region37: #{tpu_custom_call.1} parent=31 // pred_check
          %p264 = pneg %p89
        $region38: #{tpu_custom_call.1} parent=31 // pred_check_branch
          %266 = sbr.rel (%p264) target = $region40
        $region39: #{tpu_custom_call.1} parent=31 // pred_region
          %267 = dma.done %s260, 32
        $region40: #{tpu_custom_call.1} parent=31 // pred_fallthru
          _
        %s268 = sand.u32 %s28, 1
        %s269 = scalar_lea.sflag [#allocation9], %s268
        %s270 = sand.u32 %s102, 1
        %s271 = scalar_lea.vmem [#allocation10], %s270
        // Predicated region
        $region41: #{tpu_custom_call.1} parent=31 // pred_check
          %p272 = pneg %p115
        $region42: #{tpu_custom_call.1} parent=31 // pred_check_branch
          %274 = sbr.rel (%p272) target = $region44
        $region43: #{tpu_custom_call.1} parent=31 // pred_region
          %275 = dma.done %s269, 16
        $region44: #{tpu_custom_call.1} parent=31 // pred_fallthru
          _
        %s276 = sand.u32 %s50, 1
        %s277 = scalar_lea.sflag [#allocation6], %s276
        %s278 = sand.u32 %s50, 1
        %s279 = smul.addr %s278, 16
        %s280 = scalar_lea.vmem [#allocation5], %s279
        %p281 = pneg %p63
        %p282 = pneg %p60
        %s283 = sand.u32 %s28, 1
        %s284 = scalar_lea.sflag [#allocation9], %s283
        %s285 = sand.u32 %s76, 1
        %s286 = smul.addr %s285, 2
        %s287 = scalar_lea.vmem [#allocation8], %s286
        %p288 = pneg %p89
        %p289 = pneg %p86
        %s290 = sand.u32 %s28, 1
        %s291 = scalar_lea.sflag [#allocation9], %s290
        %s292 = sand.u32 %s102, 1
        %s293 = scalar_lea.vmem [#allocation10], %s292
        %p294 = pneg %p115
        %p295 = pneg %p112
        %p296 = pneg %p141
        %p297 = pneg %p138
        %s298 = sand.u32 %s128, 1
        %s299 = scalar_lea.sflag [#allocation7], %s298
        %s300 = sand.u32 %s128, 1
        %s301 = smul.addr %s300, 2
        %s302 = scalar_lea.vmem [#allocation11], %s301
        %p303 = pneg %p167
        %p304 = pneg %p164
        %s305 = sand.u32 %s154, 1
        %s306 = scalar_lea.sflag [#allocation13], %s305
        %s307 = sand.u32 %s154, 1
        %s308 = smul.addr %s307, 2
        %s309 = scalar_lea.vmem [#allocation12], %s308
        %v310 = vld [vmem:[%s254] sm:$0xf]
        %v311 = vld [vmem:[%s254 + $0x4] sm:$0xf]
        %v312 = vld [vmem:[%s254 + $0x8] sm:$0xf]
        %v313 = vld [vmem:[%s254 + $0xc] sm:$0xf]
        %v314 = vunpack.c.l.bf16 %v310
        %v315 = vunpack.c.l.bf16 %v311
        %v316 = vunpack.c.l.bf16 %v312
        %v317 = vunpack.c.l.bf16 %v313
        %v318 = vld [vmem:[%s263] sm:$0x3]
        %v319 = vmax.f32 %v314, %v315
        %v320 = vrot.slane %v319, 4
        %v321 = vmax.f32 %v319, %v320
        %v322 = vrot.slane %v321, 2
        %v323 = vmax.f32 %v321, %v322
        %v324 = vrot.slane %v323, 1
        %v325 = vmax.f32 %v323, %v324
        %v326 = vmax.f32 %v316, %v317
        %v327 = vrot.slane %v326, 4
        %v328 = vmax.f32 %v326, %v327
        %v329 = vrot.slane %v328, 2
        %v330 = vmax.f32 %v328, %v329
        %v331 = vrot.slane %v330, 1
        %v332 = vmax.f32 %v330, %v331
        %v333 = vsub.f32 %v314, %v325
        %v334 = vsub.f32 %v315, %v325
        %v335 = vsub.f32 %v316, %v332
        %v336 = vsub.f32 %v317, %v332
        %v337 = vmul.f32 %v333, 1.442695
        %v338 = vpow.pop %v337
        %v339 = vmul.f32 %v334, 1.442695
        %v340 = vpow.pop %v339
        %v341 = vmul.f32 %v335, 1.442695
        %v342 = vpow.pop %v341
        %v343 = vmul.f32 %v336, 1.442695
        %v344 = vpow.pop %v343
        %v345 = vadd.f32 %v338, %v340
        %v346 = vrot.slane %v345, 4
        %v347 = vadd.f32 %v345, %v346
        %v348 = vrot.slane %v347, 2
        %v349 = vadd.f32 %v347, %v348
        %v350 = vrot.slane %v349, 1
        %v351 = vadd.f32 %v349, %v350
        %v352 = vadd.f32 %v342, %v344
        %v353 = vrot.slane %v352, 4
        %v354 = vadd.f32 %v352, %v353
        %v355 = vrot.slane %v354, 2
        %v356 = vadd.f32 %v354, %v355
        %v357 = vrot.slane %v356, 1
        %v358 = vadd.f32 %v356, %v357
        %v359 = vlog2.pop %v351
        %v360 = vmul.f32 %v359, 0.6931472
        %v361 = vlog2.pop %v358
        %v362 = vmul.f32 %v361, 0.6931472
        %v363 = vsub.f32 %v333, %v360
        %v364 = vsub.f32 %v334, %v360
        %v365 = vsub.f32 %v335, %v362
        %v366 = vsub.f32 %v336, %v362
        %p367 = scmp.eq.s32.totalorder %s33, 0
        // Predicated region
        $region45: #{tpu_custom_call.1} parent=31 // pred_check
          %p368 = pneg %p367
        $region46: #{tpu_custom_call.1} parent=31 // pred_check_branch
          %370 = sbr.rel (%p368) target = $region48
        $region47: #{tpu_custom_call.1} parent=31 // pred_region
          %371 = vst [vmem:[#allocation2] sm:$0x3] 0.0
          %372 = vst [vmem:[#allocation3] sm:$0x3] 0.0
        $region48: #{tpu_custom_call.1} parent=31 // pred_fallthru
          _
        %v373 = vlaneseq
        %v374 = vshrl.u32 %v373, 7
        %v375 = vadd.s32 %v374, 8
        %v377 = vunpack.c.l.s4 1966171168
        %v378 = vunpack.c.0.s8 %v377
        %v379 = vlaneseq
        %v380 = vshrl.u32 %v379, 7
        %v381 = vsub.s32 %v378, %v380
        %v382 = vrot.slane %v318, %v381
        %v383 = vcombine.high %v382, %v382
        %v385 = vunpack.c.l.s4 1966171168
        %v386 = vunpack.c.0.s8 %v385
        %v387 = vlaneseq
        %v388 = vshrl.u32 %v387, 7
        %v389 = vsub.s32 %v386, %v388
        %v390 = vrot.slane %v382, %v389
        %v392 = vunpack.c.l.s4 1966171168
        %v393 = vunpack.c.0.s8 %v392
        %v394 = vlaneseq
        %v395 = vshrl.u32 %v394, 7
        %v396 = vsub.s32 %v393, %v395
        %v397 = vrot.slane %v383, %v396
        %v398 = vlaneseq
        %v399 = vshrl.u32 %v398, 7
        %v400 = vsub.s32 0, %v399
        %v401 = vrot.slane %v390, %v400
        %v402 = vlaneseq
        %v403 = vshrl.u32 %v402, 7
        %v404 = vsub.s32 0, %v403
        %v405 = vrot.slane %v397, %v404
        %vm406 = vcmp.eq.s32.totalorder %v374, %v401
        %vm407 = vcmp.eq.s32.totalorder %v375, %v401
        %vm408 = vcmp.eq.s32.totalorder %v374, %v405
        %vm409 = vcmp.eq.s32.totalorder %v375, %v405
        %v410 = vsel %vm406, %v363, 0.0
        %v411 = vsel %vm407, %v364, 0.0
        %v412 = vsel %vm408, %v365, 0.0
        %v413 = vsel %vm409, %v366, 0.0
        %v414 = vld [vmem:[#allocation2] sm:$0x3]
        %v415 = vadd.f32 %v410, %v411
        %v416 = vrot.slane %v415, 4
        %v417 = vadd.f32 %v415, %v416
        %v418 = vrot.slane %v417, 2
        %v419 = vadd.f32 %v417, %v418
        %v420 = vrot.slane %v419, 1
        %v421 = vadd.f32 %v419, %v420
        %v422 = vadd.f32 %v412, %v413
        %v423 = vrot.slane %v422, 4
        %v424 = vadd.f32 %v422, %v423
        %v425 = vrot.slane %v424, 2
        %v426 = vadd.f32 %v424, %v425
        %v427 = vrot.slane %v426, 1
        %v428 = vadd.f32 %v426, %v427
        %vm431 = vcmask 1041409
        %v432 = vsel %vm431, %v428, %v421
        %v434 = vadd.f32 %v414, %v432
        %435 = vst [vmem:[#allocation2] sm:$0x3] %v434
        %v436 = vld [vmem:[%s271] sm:$0x1]
        %v437 = vunpack.c.l.bf16 %v436
        %438 = vrot.lane.b32.xlu0 %v363, 1
        %v439 = vpop.permute.xlu0 %438
        %440 = vrot.lane.b32.xlu0 %v364, 1
        %v441 = vpop.permute.xlu0 %440
        %442 = vrot.lane.b32.xlu0 %v365, 1
        %v443 = vpop.permute.xlu0 %442
        %444 = vrot.lane.b32.xlu0 %v366, 1
        %v445 = vpop.permute.xlu0 %444
        %v446 = vlaneseq
        %v447 = vand.u32 %v446, 127
        %vm448 = vcmp.eq.s32.totalorder %v447, 0
        %p449 = scmp.gt.s32.totalorder %s33, 0
        %v450 = vld [vmem:[#allocation4] sm:$0xff]
        %v451 = vld [vmem:[#allocation4 + $0x8] sm:$0xff]
        %v452 = vld [vmem:[#allocation4 + $0x10] sm:$0xff]
        %v453 = vld [vmem:[#allocation4 + $0x18] sm:$0xff]
        %s454 = scalar_select %p449, 1, 0
        %v455 = vstv %s454
        %vm456 = vcmp.eq.s32.totalorder %v455, 1
        %v457 = vsel %vm456, %v450, %v363
        %v458 = vsel %vm456, %v451, %v364
        %v459 = vsel %vm456, %v452, %v365
        %v460 = vsel %vm456, %v453, %v366
        %v461 = vsel %vm448, 1, 0
        %vm462 = vcmp.eq.s32.totalorder %v461, 1
        %464 = vset.pattern.permute.xlu0 0
        %465 = vperm.xlu0 %464, %v457
        %v466 = vpop.permute.xlu0 %465
        %469 = vset.pattern.permute.xlu0 0
        %470 = vperm.xlu0 %469, %v458
        %v471 = vpop.permute.xlu0 %470
        %474 = vset.pattern.permute.xlu0 0
        %475 = vperm.xlu0 %474, %v459
        %v476 = vpop.permute.xlu0 %475
        %479 = vset.pattern.permute.xlu0 0
        %480 = vperm.xlu0 %479, %v460
        %v481 = vpop.permute.xlu0 %480
        %v483 = vsel %vm462, %v466, %v439
        %v484 = vsel %vm462, %v471, %v441
        %v485 = vsel %vm462, %v476, %v443
        %v486 = vsel %vm462, %v481, %v445
        %v487 = vsub.f32 %v363, %v483
        %v488 = vsub.f32 %v364, %v484
        %v489 = vsub.f32 %v365, %v485
        %v490 = vsub.f32 %v366, %v486
        %v491 = vmul.f32 %v487, %v487
        %v492 = vmul.f32 %v488, %v488
        %v493 = vmul.f32 %v489, %v489
        %v494 = vmul.f32 %v490, %v490
        %v495 = vmin.f32 %v491, 16.0
        %v496 = vmin.f32 %v492, 16.0
        %v497 = vmin.f32 %v493, 16.0
        %v498 = vmin.f32 %v494, 16.0
        %v499 = vld [vmem:[#allocation3] sm:$0x3]
        %v500 = vadd.f32 %v495, %v496
        %v501 = vrot.slane %v500, 4
        %v502 = vadd.f32 %v500, %v501
        %v503 = vrot.slane %v502, 2
        %v504 = vadd.f32 %v502, %v503
        %v505 = vrot.slane %v504, 1
        %v506 = vadd.f32 %v504, %v505
        %v507 = vadd.f32 %v497, %v498
        %v508 = vrot.slane %v507, 4
        %v509 = vadd.f32 %v507, %v508
        %v510 = vrot.slane %v509, 2
        %v511 = vadd.f32 %v509, %v510
        %v512 = vrot.slane %v511, 1
        %v513 = vadd.f32 %v511, %v512
        %v516 = vunpack.c.l.s4 1983009808
        %v517 = vunpack.c.0.s8 %v516
        %v518 = vlaneseq
        %v519 = vshrl.u32 %v518, 7
        %v520 = vsub.s32 %v517, %v519
        %v521 = vrot.slane %v437, %v520
        %v522 = vrot.slane %v521, 1
        %v525 = vmul.f32 %v506, %v521
        %v526 = vmul.f32 %v513, %v522
        %v529 = vrot.slane %v526, 7
        %v530 = vsel %vm431, %v529, %v525
        %v532 = vadd.f32 %v499, %v530
        %533 = vst [vmem:[#allocation3] sm:$0x3] %v532
        %vm534 = vcmask 7168
        %535 = vst.msk [vmem:[#allocation4] sm:$0xff] %vm534, %v439
        %536 = vst.msk [vmem:[#allocation4 + $0x8] sm:$0xff] %vm534, %v441
        %537 = vst.msk [vmem:[#allocation4 + $0x10] sm:$0xff] %vm534, %v443
        %538 = vst.msk [vmem:[#allocation4 + $0x18] sm:$0xff] %vm534, %v445
        %p539 = scmp.eq.s32.totalorder %s33, 1
        // Predicated region
        $region49: #{tpu_custom_call.1} parent=31 // pred_check
          %p540 = pneg %p539
        $region50: #{tpu_custom_call.1} parent=31 // pred_check_branch
          %542 = sbr.rel (%p540) target = $region52
        $region51: #{tpu_custom_call.1} parent=31 // pred_region
          %v543 = vld [vmem:[#allocation2] sm:$0x3]
          %vm544 = vcmask 1041408
          %v545 = vsel %vm544, %v543, 0.0
          %546 = vadd.xlane.f32.xlu0 %v545
          %v547 = vpop.xlane.xlu0 %546
          %v548 = vsub.f32 0.0, %v547
          %549 = vst [vmem:[%s302] sm:$0x3] %v548
          %v550 = vld [vmem:[#allocation3] sm:$0x3]
          %v551 = vsel %vm544, %v550, 0.0
          %552 = vadd.xlane.f32.xlu0 %v551
          %v553 = vpop.xlane.xlu0 %552
          %554 = vst [vmem:[%s309] sm:$0x3] %v553
        $region52: #{tpu_custom_call.1} parent=31 // pred_fallthru
          _
        %s555 = sand.u32 %s128, 1
        %s556 = scalar_lea.sflag [#allocation7], %s555
        %s557 = sand.u32 %s128, 1
        %s558 = smul.addr %s557, 2
        %s559 = scalar_lea.vmem [#allocation11], %s558
        %s560 = sand.u32 %s154, 1
        %s561 = scalar_lea.sflag [#allocation13], %s560
        %s562 = sand.u32 %s154, 1
        %s563 = smul.addr %s562, 2
        %s564 = scalar_lea.vmem [#allocation12], %s563
        // Predicated region
        $region53: #{tpu_custom_call.1} parent=31 // pred_check
          %p565 = pneg %p138
        $region54: #{tpu_custom_call.1} parent=31 // pred_check_branch
          %567 = sbr.rel (%p565) target = $region56
        $region55: #{tpu_custom_call.1} parent=31 // pred_region
          %s569 = ssub.s32 32, 32
          %570 = vsyncadd %s556, %s569
          %s571 = smul.addr %s32, 32
          %s572 = scalar_lea.hbm %s3, %s571
          %s574 = sshll.u32 %s559, 4
          %s575 = int_to_ptr.vmem [resolvable:$true] %s574
          %577 = dma.vmem_to_hbm [thread:$0]  %s575, 32, %s572, %s556
        $region56: #{tpu_custom_call.1} parent=31 // pred_fallthru
          _
        // Predicated region
        $region57: #{tpu_custom_call.1} parent=31 // pred_check
          %p578 = pneg %p164
        $region58: #{tpu_custom_call.1} parent=31 // pred_check_branch
          %580 = sbr.rel (%p578) target = $region60
        $region59: #{tpu_custom_call.1} parent=31 // pred_region
          %s582 = ssub.s32 32, 32
          %583 = vsyncadd %s561, %s582
          %s584 = smul.addr %s32, 32
          %s585 = scalar_lea.hbm %s4, %s584
          %s587 = sshll.u32 %s564, 4
          %s588 = int_to_ptr.vmem [resolvable:$true] %s587
          %590 = dma.vmem_to_hbm [thread:$0]  %s588, 32, %s585, %s561
        $region60: #{tpu_custom_call.1} parent=31 // pred_fallthru
          _
      $region32: #{tpu_custom_call.1} parent=5 // pred_fallthru
        _
      %p591 = scmp.le.s32.totalorder 2, %s23
      // Predicated region
      $region61: #{tpu_custom_call.1} parent=5 // pred_check
        %p592 = pneg %p591
      $region62: #{tpu_custom_call.1} parent=5 // pred_check_branch
        %594 = sbr.rel (%p592) target = $region64
      $region63: #{tpu_custom_call.1} parent=5 // pred_region
        %s595 = ssub.s32 %s23, 2
        // Predicated region
        $region65: #{tpu_custom_call.1} parent=63 // pred_check
          %p596 = pneg %p144
        $region66: #{tpu_custom_call.1} parent=63 // pred_check_branch
          %598 = sbr.rel (%p596) target = $region68
        $region67: #{tpu_custom_call.1} parent=63 // pred_region
          %s599 = sand.u32 %s129, 1
          %s600 = scalar_lea.sflag [#allocation7], %s599
          %s601 = sand.u32 %s129, 1
          %s602 = smul.addr %s601, 2
          %s603 = scalar_lea.vmem [#allocation11], %s602
          %604 = dma.done %s600, 32
        $region68: #{tpu_custom_call.1} parent=63 // pred_fallthru
          _
        // Predicated region
        $region69: #{tpu_custom_call.1} parent=63 // pred_check
          %p605 = pneg %p170
        $region70: #{tpu_custom_call.1} parent=63 // pred_check_branch
          %607 = sbr.rel (%p605) target = $region72
        $region71: #{tpu_custom_call.1} parent=63 // pred_region
          %s608 = sand.u32 %s155, 1
          %s609 = scalar_lea.sflag [#allocation13], %s608
          %s610 = sand.u32 %s155, 1
          %s611 = smul.addr %s610, 2
          %s612 = scalar_lea.vmem [#allocation12], %s611
          %613 = dma.done %s609, 32
        $region72: #{tpu_custom_call.1} parent=63 // pred_fallthru
          _
      $region64: #{tpu_custom_call.1} parent=5 // pred_fallthru
        _
    $region6: #{tpu_custom_call.1} parent=1 // loop_footer
      %s27 = sadd.s32 1, %s23
    $region7: #{tpu_custom_call.1} parent=1 // loop_footer_branch
      %22 = sbr.rel target = $region3
    $region8: #{tpu_custom_call.1} parent=1 // loop_exit
      _
    %614 = vsyncpa [#allocation6], 1
    %s615 = scalar_lea.sflag [#allocation6], 1
    %616 = vsyncpa %s615, 1
    %617 = vsyncpa [#allocation9], 1
    %s618 = scalar_lea.sflag [#allocation9], 1
    %619 = vsyncpa %s618, 1
    %620 = vsyncpa [#allocation7], 1
    %s621 = scalar_lea.sflag [#allocation7], 1
    %622 = vsyncpa %s621, 1
    %623 = vsyncpa [#allocation13], 1
    %s624 = scalar_lea.sflag [#allocation13], 1
    %625 = vsyncpa %s624, 1

</llo_original>
